<compile_context>
chip_gen: v7x
topology: tpu7x:2x2x1
jax: 0.10.0
libtpu: 0.0.40
codegen_flags: <defaults>
</compile_context>

<pallas_src>
import jax
import jax.numpy as jnp
import numpy as np
from jax.experimental import pallas as pl
from jax.experimental.pallas import tpu as pltpu

LANE = 128
_GATE_PERM = (0, 1, 3, 2)  # torch gate order [i, f, g, o] -> packed order [i, f, o, g]


# -----------------------------------------------------------------------------
# Helpers
# -----------------------------------------------------------------------------
def _largest_divisor_tile(n, target, step):
    """Largest multiple of `step` that is <= min(n, target) and divides n
    (falls back to the full extent n, which is always a legal block)."""
    t = min(n, max(step, target))
    t -= t % step
    while t > step and n % t:
        t -= step
    return t if (t >= 1 and n % t == 0) else n


# -----------------------------------------------------------------------------
# Pallas kernels
# -----------------------------------------------------------------------------
def _proj1_kernel(x_ref, w_ref, b_ref, gf_ref, gb_ref):
    """gates_x = x @ W_ih_cat + b_cat  (both directions in one MXU matmul).
    x / W are bf16, accumulation + bias add in f32, result stored bf16 split into
    the two per-direction slabs (so the recurrence can stream each half separately)."""
    g = jnp.dot(x_ref[...], w_ref[...], preferred_element_type=jnp.float32) + b_ref[...]
    half = gf_ref.shape[-1]
    gf_ref[...] = g[:, :half].astype(gf_ref.dtype)
    gb_ref[...] = g[:, half:].astype(gb_ref.dtype)


def _proj2_kernel(xf_ref, xb_ref, wf_ref, wb_ref, b_ref, gf_ref, gb_ref):
    """Same as _proj1_kernel, but the layer input arrives as the two direction slabs
    of the previous bidirectional layer (avoids materializing a concat)."""
    g = (jnp.dot(xf_ref[...], wf_ref[...], preferred_element_type=jnp.float32)
         + jnp.dot(xb_ref[...], wb_ref[...], preferred_element_type=jnp.float32)
         + b_ref[...])
    half = gf_ref.shape[-1]
    gf_ref[...] = g[:, :half].astype(gf_ref.dtype)
    gb_ref[...] = g[:, half:].astype(gb_ref.dtype)


def _bidir_recurrence_kernel(gxf_hbm, gxb_hbm, whh_ref, out_f_hbm, out_b_hbm,
                             gxf_buf, gxb_buf, of_buf, ob_buf,
                             in_sem, out_sem, h_ref, c_ref):
    """Fused fwd+bwd LSTM recurrence over the whole sequence.

    gxf_hbm/gxb_hbm: (seq, Bp, 4Hp) bf16 precomputed x@W_ih + b, per direction (HBM).
    whh_ref:         (2Hp, 8Hp) bf16 block-diagonal recurrent weights (VMEM).
    out_*_hbm:       (seq, Bp, Hp) bf16 per-direction hidden outputs (HBM, DMA'd).
    gxf/gxb/of/ob_buf: double-buffered VMEM staging chunks.
    h_ref/c_ref:     (Bp, 2Hp) f32 state, columns [h_f | h_b] / [c_f | c_b].

    The fwd stream walks time chunks ascending, the bwd stream descending; within a
    chunk the bwd direction is indexed with tlb = chunk-1-tl.  Gate column order per
    direction is [i, f, o, g] so one sigmoid + one tanh cover all gates per step.
    """
    seq = gxf_hbm.shape[0]
    chunk = gxf_buf.shape[1]
    nchunks = seq // chunk
    Hp = of_buf.shape[-1]
    unroll = 4 if chunk % 4 == 0 else (2 if chunk % 2 == 0 else 1)

    def in_copies(ci, slot):
        sf = pl.multiple_of(ci * chunk, chunk)                     # fwd: ascending
        sb = pl.multiple_of((nchunks - 1 - ci) * chunk, chunk)     # bwd: descending
        return (pltpu.make_async_copy(gxf_hbm.at[pl.ds(sf, chunk)], gxf_buf.at[slot],
                                      in_sem.at[0, slot]),
                pltpu.make_async_copy(gxb_hbm.at[pl.ds(sb, chunk)], gxb_buf.at[slot],
                                      in_sem.at[1, slot]))

    def out_copies(ci, slot):
        sf = pl.multiple_of(ci * chunk, chunk)
        sb = pl.multiple_of((nchunks - 1 - ci) * chunk, chunk)
        return (pltpu.make_async_copy(of_buf.at[slot], out_f_hbm.at[pl.ds(sf, chunk)],
                                      out_sem.at[0, slot]),
                pltpu.make_async_copy(ob_buf.at[slot], out_b_hbm.at[pl.ds(sb, chunk)],
                                      out_sem.at[1, slot]))

    h_ref[...] = jnp.zeros_like(h_ref)
    c_ref[...] = jnp.zeros_like(c_ref)

    # Prime the input pipeline.
    for cp in in_copies(0, 0):
        cp.start()

    def chunk_body(ci, carry):
        slot = ci & 1

        # Wait for this chunk's gate projections.
        for cp in in_copies(ci, slot):
            cp.wait()

        # Prefetch the next chunk into the other slot.
        @pl.when(ci + 1 < nchunks)
        def _():
            for cp in in_copies(ci + 1, 1 - slot):
                cp.start()

        # This output staging slot was last used by chunk ci-2; its writeback must
        # have drained before we overwrite it (the descriptor only sets the wait size).
        @pl.when(ci >= 2)
        def _():
            for cp in out_copies(ci, slot):
                cp.wait()

        def step(tl, inner_carry):
            tlb = chunk - 1 - tl
            # One block-diagonal matmul for both directions: K = 2Hp fills the MXU.
            hh = jnp.dot(h_ref[...].astype(jnp.bfloat16), whh_ref[...],
                         preferred_element_type=jnp.float32)          # (Bp, 8Hp)
            gates_f = gxf_buf[slot, tl].astype(jnp.float32) + hh[:, :4 * Hp]
            gates_b = gxb_buf[slot, tlb].astype(jnp.float32) + hh[:, 4 * Hp:]
            # Packed per-direction gate order: [i, f, o | g].
            pre_sig = jnp.concatenate([gates_f[:, :3 * Hp], gates_b[:, :3 * Hp]], axis=1)
            pre_tan = jnp.concatenate([gates_f[:, 3 * Hp:], gates_b[:, 3 * Hp:]], axis=1)
            sig = jax.nn.sigmoid(pre_sig)      # 1 EUP pass: i/f/o, both directions
            g = jnp.tanh(pre_tan)              # 1 EUP pass: g, both directions
            i_g = jnp.concatenate([sig[:, 0 * Hp:1 * Hp], sig[:, 3 * Hp:4 * Hp]], axis=1)
            f_g = jnp.concatenate([sig[:, 1 * Hp:2 * Hp], sig[:, 4 * Hp:5 * Hp]], axis=1)
            o_g = jnp.concatenate([sig[:, 2 * Hp:3 * Hp], sig[:, 5 * Hp:6 * Hp]], axis=1)
            c_new = f_g * c_ref[...] + i_g * g
            h_new = o_g * jnp.tanh(c_new)      # 1 EUP pass: both directions
            c_ref[...] = c_new
            h_ref[...] = h_new
            of_buf[slot, tl] = h_new[:, :Hp].astype(jnp.bfloat16)
            ob_buf[slot, tlb] = h_new[:, Hp:].astype(jnp.bfloat16)
            return inner_carry

        jax.lax.fori_loop(0, chunk, step, 0, unroll=unroll)

        # Kick off this chunk's asynchronous writeback.
        for cp in out_copies(ci, slot):
            cp.start()
        return carry

    jax.lax.fori_loop(0, nchunks, chunk_body, 0)

    # Drain the last (up to two) outstanding output writebacks before exiting.
    for s in range(min(nchunks, 2)):
        for cp in out_copies(0, s):
            cp.wait()


# -----------------------------------------------------------------------------
# Pallas wrappers
# -----------------------------------------------------------------------------
def input_projection(x2d, w, b):
    """(M, In) bf16 @ (In, 8Hp) bf16 + (1, 8Hp) f32 -> two bf16 (M, 4Hp) slabs."""
    M, K = x2d.shape
    G2 = w.shape[1]
    G = G2 // 2
    TM = _largest_divisor_tile(M, 512, 8)
    return pl.pallas_call(
        _proj1_kernel,
        out_shape=(jax.ShapeDtypeStruct((M, G), jnp.bfloat16),
                   jax.ShapeDtypeStruct((M, G), jnp.bfloat16)),
        grid=(M // TM,),
        in_specs=[pl.BlockSpec((TM, K), lambda i: (i, 0)),
                  pl.BlockSpec((K, G2), lambda i: (0, 0)),
                  pl.BlockSpec((1, G2), lambda i: (0, 0))],
        out_specs=(pl.BlockSpec((TM, G), lambda i: (i, 0)),
                   pl.BlockSpec((TM, G), lambda i: (i, 0))),
        compiler_params=pltpu.CompilerParams(dimension_semantics=("parallel",)),
    )(x2d, w, b)


def input_projection2(xf2d, xb2d, wf, wb, b):
    """Projection for layers > 0, consuming the two direction slabs directly."""
    M, Hp = xf2d.shape
    G2 = wf.shape[1]
    G = G2 // 2
    TM = _largest_divisor_tile(M, 512, 8)
    return pl.pallas_call(
        _proj2_kernel,
        out_shape=(jax.ShapeDtypeStruct((M, G), jnp.bfloat16),
                   jax.ShapeDtypeStruct((M, G), jnp.bfloat16)),
        grid=(M // TM,),
        in_specs=[pl.BlockSpec((TM, Hp), lambda i: (i, 0)),
                  pl.BlockSpec((TM, Hp), lambda i: (i, 0)),
                  pl.BlockSpec((Hp, G2), lambda i: (0, 0)),
                  pl.BlockSpec((Hp, G2), lambda i: (0, 0)),
                  pl.BlockSpec((1, G2), lambda i: (0, 0))],
        out_specs=(pl.BlockSpec((TM, G), lambda i: (i, 0)),
                   pl.BlockSpec((TM, G), lambda i: (i, 0))),
        compiler_params=pltpu.CompilerParams(dimension_semantics=("parallel",)),
    )(xf2d, xb2d, wf, wb, b)


def bidir_recurrence(gxf, gxb, whh_bd, Hp):
    """gxf/gxb: (seq, Bp, 4Hp) bf16 -> (out_fwd, out_bwd), each (seq, Bp, Hp) bf16."""
    seq, Bp, _ = gxf.shape
    chunk = _largest_divisor_tile(seq, 32, 1)
    out_sds = jax.ShapeDtypeStruct((seq, Bp, Hp), jnp.bfloat16)
    # NOTE: chunked staging keeps VMEM small; if chunk/Bp/Hp are raised a lot, also
    # raise vmem_limit_bytes in CompilerParams (scoped defaults: 16 MiB v5e, 32 MiB
    # v6e/v7x) and re-derive against v7x's 64 MiB physical VMEM.
    return pl.pallas_call(
        _bidir_recurrence_kernel,
        out_shape=(out_sds, out_sds),
        grid_spec=pltpu.PrefetchScalarGridSpec(
            num_scalar_prefetch=0,
            grid=(1,),
            in_specs=[
                pl.BlockSpec(memory_space=pl.ANY),                  # gx fwd (HBM)
                pl.BlockSpec(memory_space=pl.ANY),                  # gx bwd (HBM)
                pl.BlockSpec((2 * Hp, 8 * Hp), lambda i: (0, 0)),   # fused W_hh (VMEM)
            ],
            out_specs=[
                pl.BlockSpec(memory_space=pl.ANY),                  # out fwd (HBM)
                pl.BlockSpec(memory_space=pl.ANY),                  # out bwd (HBM)
            ],
            scratch_shapes=[
                pltpu.VMEM((2, chunk, Bp, 4 * Hp), jnp.bfloat16),   # gx fwd staging
                pltpu.VMEM((2, chunk, Bp, 4 * Hp), jnp.bfloat16),   # gx bwd staging
                pltpu.VMEM((2, chunk, Bp, Hp), jnp.bfloat16),       # out fwd staging
                pltpu.VMEM((2, chunk, Bp, Hp), jnp.bfloat16),       # out bwd staging
                pltpu.SemaphoreType.DMA((2, 2)),                    # input sems
                pltpu.SemaphoreType.DMA((2, 2)),                    # output sems
                pltpu.VMEM((Bp, 2 * Hp), jnp.float32),              # h = [h_f | h_b]
                pltpu.VMEM((Bp, 2 * Hp), jnp.float32),              # c = [c_f | c_b]
            ],
        ),
        compiler_params=pltpu.CompilerParams(dimension_semantics=("arbitrary",)),
    )(gxf, gxb, whh_bd)


# -----------------------------------------------------------------------------
# Parameter preparation (pad H to 128 lanes, reorder gates, pre-pack bf16 weights)
# -----------------------------------------------------------------------------
def _pack_gate_cols(w, H, Hp):
    """(..., 4H) torch gate order [i,f,g,o] -> (..., 4Hp) packed order [i,f,o,g],
    each gate zero-padded from H to Hp columns (padded columns are exactly 0)."""
    out = jnp.zeros(w.shape[:-1] + (4 * Hp,), w.dtype)
    for k, src in enumerate(_GATE_PERM):
        out = out.at[..., k * Hp:k * Hp + H].set(w[..., src * H:(src + 1) * H])
    return out


def prepare_kernel_params(params, num_hiddens, lane=LANE):
    """Padding is exact: padded gate columns have zero weights & bias, so padded
    h/c lanes stay identically 0 and never pollute the real columns."""
    H = num_hiddens
    Hp = ((H + lane - 1) // lane) * lane
    kp = {"Hp": Hp, "embedding": params["embedding"].astype(jnp.bfloat16)}

    def pad_rows(w):   # (H, N) -> (Hp, N), padded rows are zero
        return jnp.zeros((Hp, w.shape[-1]), w.dtype).at[:H].set(w)

    layers = []
    for li, layer in enumerate(params["lstm_layers"]):
        w_ih_f, w_hh_f, b_f = layer["fwd"]
        w_ih_b, w_hh_b, b_b = layer["bwd"]
        b_cat = jnp.concatenate([_pack_gate_cols(b_f, H, Hp),
                                 _pack_gate_cols(b_b, H, Hp)], axis=1)      # (1, 8Hp)
        # Block-diagonal fused recurrent weight: [h_f | h_b] (B,2Hp) @ (2Hp,8Hp).
        whh_bd = jnp.zeros((2 * Hp, 8 * Hp), jnp.float32)
        whh_bd = whh_bd.at[:H, :4 * Hp].set(_pack_gate_cols(w_hh_f, H, Hp))
        whh_bd = whh_bd.at[Hp:Hp + H, 4 * Hp:].set(_pack_gate_cols(w_hh_b, H, Hp))
        entry = {"b": b_cat, "whh_bd": whh_bd.astype(jnp.bfloat16)}

        wih_cat = jnp.concatenate([_pack_gate_cols(w_ih_f, H, Hp),
                                   _pack_gate_cols(w_ih_b, H, Hp)], axis=1)  # (In, 8Hp)
        if li == 0:
            entry["wih"] = wih_cat.astype(jnp.bfloat16)                      # (E, 8Hp)
        else:
            # Split input rows by which previous-layer direction slab feeds them.
            entry["wih_f_in"] = pad_rows(wih_cat[:H]).astype(jnp.bfloat16)   # (Hp, 8Hp)
            entry["wih_b_in"] = pad_rows(wih_cat[H:2 * H]).astype(jnp.bfloat16)
        layers.append(entry)
    kp["lstm_layers"] = layers

    dec_w = params["dec_w"]                                  # (4H, 2)
    dec_w_p = jnp.zeros((4 * Hp, 2), jnp.float32)
    for k in range(4):
        dec_w_p = dec_w_p.at[k * Hp:k * Hp + H].set(dec_w[k * H:(k + 1) * H])
    kp["dec_w"] = dec_w_p
    kp["dec_b"] = params["dec_b"]
    return kp


# -----------------------------------------------------------------------------
# Forward pass
# -----------------------------------------------------------------------------
def birnn_forward(kparams, tokens):
    """tokens: (batch, seq) int32 -> logits (batch, 2)."""
    Hp = kparams["Hp"]
    B, seq = tokens.shape
    Bp = ((max(B, 8) + 7) // 8) * 8                 # pad batch to >= 8 sublanes
    tokens_p = jnp.pad(tokens, ((0, Bp - B), (0, 0)))
    # TODO(synk): embedding gather stays in XLA; a Pallas DMA-gather kernel is not
    # worth it for a single small lookup.
    x = jnp.take(kparams["embedding"], tokens_p.T, axis=0)   # (seq, Bp, E) bf16

    out_f = out_b = None
    for li, lp in enumerate(kparams["lstm_layers"]):
        if li == 0:
            gxf, gxb = input_projection(x.reshape(seq * Bp, -1), lp["wih"], lp["b"])
        else:
            gxf, gxb = input_projection2(out_f.reshape(seq * Bp, Hp),
                                         out_b.reshape(seq * Bp, Hp),
                                         lp["wih_f_in"], lp["wih_b_in"], lp["b"])
        out_f, out_b = bidir_recurrence(gxf.reshape(seq, Bp, 4 * Hp),
                                        gxb.reshape(seq, Bp, 4 * Hp),
                                        lp["whh_bd"], Hp)

    # torch.cat((outputs[0], outputs[-1]), dim=1), in the padded layout.
    encoding = jnp.concatenate([out_f[0, :B], out_b[0, :B],
                                out_f[-1, :B], out_b[-1, :B]],
                               axis=1).astype(jnp.float32)
    # Decoder left to XLA: a (B, 4Hp) x (4Hp, 2) matmul with a 2-lane output is pure
    # launch / masked-store overhead as a pallas_call.
    return encoding @ kparams["dec_w"] + kparams["dec_b"]


# -----------------------------------------------------------------------------
# Deterministic parameter init (same logical shapes/semantics as the PyTorch module)
# -----------------------------------------------------------------------------
def init_params(key, vocab_size, embed_size, num_hiddens, num_layers):
    keys = iter(jax.random.split(key, 64))
    k = 1.0 / np.sqrt(num_hiddens)

    def uni(shape):
        return jax.random.uniform(next(keys), shape, jnp.float32, -k, k)

    params = {"embedding": jax.random.normal(next(keys), (vocab_size, embed_size),
                                             jnp.float32)}
    layers = []
    in_size = embed_size
    for _ in range(num_layers):
        layer = {}
        for direction in ("fwd", "bwd"):
            w_ih = uni((in_size, 4 * num_hiddens))       # transposed vs torch (4H, In)
            w_hh = uni((num_hiddens, 4 * num_hiddens))   # transposed vs torch (4H, H)
            b = uni((1, 4 * num_hiddens)) + uni((1, 4 * num_hiddens))  # b_ih + b_hh
            layer[direction] = (w_ih, w_hh, b)
        layers.append(layer)
        in_size = 2 * num_hiddens
    params["lstm_layers"] = layers
    params["dec_w"] = uni((4 * num_hiddens, 2))          # transposed vs torch (2, 4H)
    params["dec_b"] = uni((1, 2))
    return params


# -----------------------------------------------------------------------------
# Pure-JAX f32 reference (for a correctness sanity check)
# -----------------------------------------------------------------------------
def lstm_direction_ref(x, w_ih, w_hh, b):
    H = w_hh.shape[0]
    B = x.shape[1]

    def step(carry, x_t):
        h, c = carry
        gates = x_t @ w_ih + h @ w_hh + b
        i = jax.nn.sigmoid(gates[:, 0 * H:1 * H])
        f = jax.nn.sigmoid(gates[:, 1 * H:2 * H])
        g = jnp.tanh(gates[:, 2 * H:3 * H])
        o = jax.nn.sigmoid(gates[:, 3 * H:4 * H])
        c = f * c + i * g
        h = o * jnp.tanh(c)
        return (h, c), h

    init = (jnp.zeros((B, H), jnp.float32), jnp.zeros((B, H), jnp.float32))
    _, hs = jax.lax.scan(step, init, x)
    return hs


def birnn_forward_ref(params, tokens):
    x = jnp.take(params["embedding"], tokens.T, axis=0).astype(jnp.float32)
    for layer_params in params["lstm_layers"]:
        h_f = lstm_direction_ref(x, *layer_params["fwd"])
        h_b = lstm_direction_ref(x[::-1], *layer_params["bwd"])[::-1]
        x = jnp.concatenate([h_f, h_b], axis=-1)
    encoding = jnp.concatenate([x[0], x[-1]], axis=1)
    return encoding @ params["dec_w"] + params["dec_b"]


# -----------------------------------------------------------------------------
if __name__ == "__main__":
    vocab_size, embed_size, num_hiddens, num_layers = 100, 32, 32, 2
    batch, seq = 2, 8

    key = jax.random.PRNGKey(0)
    pkey, tkey = jax.random.split(key)
    params = init_params(pkey, vocab_size, embed_size, num_hiddens, num_layers)
    kparams = prepare_kernel_params(params, num_hiddens)
    tokens = jax.random.randint(tkey, (batch, seq), 0, vocab_size, dtype=jnp.int32)

    out = jax.block_until_ready(birnn_forward(kparams, tokens))
    ref = jax.block_until_ready(birnn_forward_ref(params, tokens))

    assert out.shape == (batch, 2), out.shape
    # bf16 MXU operands + bf16 storage of gx / inter-layer h (f32 accumulation, f32
    # gate math and c state) -> looser tolerance than pure f32.
    np.testing.assert_allclose(np.asarray(out), np.asarray(ref), rtol=3e-2, atol=3e-2)
    print("KERNEL_OK")
</pallas_src>

<mosaic_0001>
module attributes {stable_mosaic.version = 11 : i64} {
  func.func @_proj1_kernel(%arg0: i32, %arg1: memref<64x32xbf16, #tpu.memory_space<vmem>>, %arg2: memref<32x1024xbf16, #tpu.memory_space<vmem>>, %arg3: memref<1x1024xf32, #tpu.memory_space<vmem>>, %arg4: memref<64x512xbf16, #tpu.memory_space<vmem>>, %arg5: memref<64x512xbf16, #tpu.memory_space<vmem>>) attributes {dimension_semantics = [#tpu.dimension_semantics<parallel>], iteration_bounds = array<i64: 1>, scalar_prefetch = 0 : i64, scratch_operands = 0 : i64, tpu.core_type = #tpu.core_type<tc>, window_params = [{transform_indices = @transform_0, window_bounds = array<i64: 64, 32>}, {pipeline_mode = #tpu.pipeline_mode<synchronous>, transform_indices = @transform_1, window_bounds = array<i64: 32, 1024>}, {pipeline_mode = #tpu.pipeline_mode<synchronous>, transform_indices = @transform_2, window_bounds = array<i64: 1, 1024>}, {transform_indices = @transform_3, window_bounds = array<i64: 64, 512>}, {transform_indices = @transform_4, window_bounds = array<i64: 64, 512>}]} {
    %c0 = arith.constant 0 : index
    %c0_0 = arith.constant 0 : index
    %0 = vector.load %arg1[%c0, %c0_0] : memref<64x32xbf16, #tpu.memory_space<vmem>>, vector<64x32xbf16>
    %c0_1 = arith.constant 0 : index
    %c0_2 = arith.constant 0 : index
    %1 = vector.load %arg2[%c0_1, %c0_2] : memref<32x1024xbf16, #tpu.memory_space<vmem>>, vector<32x1024xbf16>
    %cst = arith.constant dense<0.000000e+00> : vector<64x1024xf32>
    %2 = tpu.matmul %0, %1, %cst {dimension_numbers = #tpu.dot_dimension_numbers<[1], [0], [0], [1], [0, 0, 1, 1], [], []>} : vector<64x32xbf16>, vector<32x1024xbf16>, vector<64x1024xf32> -> vector<64x1024xf32>
    %c0_3 = arith.constant 0 : index
    %c0_4 = arith.constant 0 : index
    %3 = vector.load %arg3[%c0_3, %c0_4] : memref<1x1024xf32, #tpu.memory_space<vmem>>, vector<1x1024xf32>
    %4 = vector.broadcast %3 : vector<1x1024xf32> to vector<64x1024xf32>
    %5 = arith.addf %2, %4 : vector<64x1024xf32>
    %6 = vector.extract_strided_slice %5 {offsets = [0, 0], sizes = [64, 512], strides = [1, 1]} : vector<64x1024xf32> to vector<64x512xf32>
    %7 = arith.truncf %6 : vector<64x512xf32> to vector<64x512xbf16>
    %c0_5 = arith.constant 0 : index
    %c0_6 = arith.constant 0 : index
    %8 = vector.load %arg4[%c0_5, %c0_6] : memref<64x512xbf16, #tpu.memory_space<vmem>>, vector<64x512xbf16>
    tpu.vector_store %arg4[%c0_5, %c0_6], %7 {strides = array<i32>} : memref<64x512xbf16, #tpu.memory_space<vmem>>, vector<64x512xbf16>,
    %9 = vector.extract_strided_slice %5 {offsets = [0, 512], sizes = [64, 512], strides = [1, 1]} : vector<64x1024xf32> to vector<64x512xf32>
    %10 = arith.truncf %9 : vector<64x512xf32> to vector<64x512xbf16>
    %c0_7 = arith.constant 0 : index
    %c0_8 = arith.constant 0 : index
    %11 = vector.load %arg5[%c0_7, %c0_8] : memref<64x512xbf16, #tpu.memory_space<vmem>>, vector<64x512xbf16>
    tpu.vector_store %arg5[%c0_7, %c0_8], %10 {strides = array<i32>} : memref<64x512xbf16, #tpu.memory_space<vmem>>, vector<64x512xbf16>,
    return
  }
  func.func @transform_0(%arg0: i32) -> (i32, i32) {
    %c0_i32 = arith.constant 0 : i32
    %c0_i32_0 = arith.constant 0 : i32
    return %arg0, %c0_i32 : i32, i32
  }
  func.func @transform_1(%arg0: i32) -> (i32, i32) {
    %c0_i32 = arith.constant 0 : i32
    %c0_i32_0 = arith.constant 0 : i32
    %c0_i32_1 = arith.constant 0 : i32
    return %c0_i32, %c0_i32_0 : i32, i32
  }
  func.func @transform_2(%arg0: i32) -> (i32, i32) {
    %c0_i32 = arith.constant 0 : i32
    %c0_i32_0 = arith.constant 0 : i32
    %c0_i32_1 = arith.constant 0 : i32
    return %c0_i32, %c0_i32_0 : i32, i32
  }
  func.func @transform_3(%arg0: i32) -> (i32, i32) {
    %c0_i32 = arith.constant 0 : i32
    %c0_i32_0 = arith.constant 0 : i32
    return %arg0, %c0_i32 : i32, i32
  }
  func.func @transform_4(%arg0: i32) -> (i32, i32) {
    %c0_i32 = arith.constant 0 : i32
    %c0_i32_0 = arith.constant 0 : i32
    return %arg0, %c0_i32 : i32, i32
  }
}

</mosaic_0001>

<llo_original>
// kernel: tpu_custom_call.1
$region0: #{tpu_custom_call.1}
  #allocation0 [shape = 'u32[]', space=smem, size = 0x4, offset = 0x4, fixed_abs, tag = 'smem constant byte address 0x4 - core index']
  #allocation1 [shape = 'u32[144,128]{1,0:T(1,128)}', space=vmem, size = 0x12000, scoped, tag = 'internal scratch']
  %s0 = inlined_call_operand.vmem [shape: bf16[64,32], index: 0, kind: input, shape index: {}]
  %s1 = inlined_call_operand.hbm [shape: bf16[32,1024], index: 1, kind: input, shape index: {}]
  %s2 = inlined_call_operand.vmem [shape: f32[1,1024], index: 2, kind: input, shape index: {}]
  %s3 = inlined_call_operand.hbm [shape: bf16[64,512], index: 3, kind: output, shape index: {0}]
  %s4 = inlined_call_operand.hbm [shape: bf16[64,512], index: 4, kind: output, shape index: {1}]
  %5 = xla_tuple %s3, %s4
  %s6 = sld [smem:[#allocation0]]
  $region34: #{tpu_custom_call.1} parent=0
    _
  %s8 = ssub.s32 1, %s6
  %s9 = scalar_select 0, %s8, %s6
  $region1: #{tpu_custom_call.1} parent=0
    #allocation2 [shape = 'u8[65536]{0}', space=vmem, size = 0x10000, scoped, tag = 'input window, operand 1, single buffered']
    #allocation3 [shape = 's32[1]{0}', space=sflag, size = 0x4, scoped, tag = 'scoped memory for tpu_custom_call.1']
    #allocation4 [shape = 's32[1]{0}', space=sflag, size = 0x4, scoped, tag = 'scoped memory for tpu_custom_call.1']
    #allocation5 [shape = 'u8[65536]{0}', space=vmem, size = 0x10000, scoped, tag = 'output window, operand 0, single buffered']
    #allocation6 [shape = 'u8[65536]{0}', space=vmem, size = 0x10000, scoped, tag = 'output window, operand 1, single buffered']
    #allocation7 [shape = 's32[1]{0}', space=sflag, size = 0x4, scoped, tag = 'scoped memory for tpu_custom_call.1']
    %10 = vsyncpa [#allocation3], 0
    %11 = vsyncpa [#allocation4], 0
    %12 = vsyncpa [#allocation7], 0
    // Predicated region
    $region2: #{tpu_custom_call.1} parent=1 // pred_check
      _
    $region3: #{tpu_custom_call.1} parent=1 // pred_check_branch
      %14 = sbr.rel (0) target = $region5
    $region4: #{tpu_custom_call.1} parent=1 // pred_region
      _
    $region5: #{tpu_custom_call.1} parent=1 // pred_fallthru
      _
    // Predicated region
    $region6: #{tpu_custom_call.1} parent=1 // pred_check
      _
    $region7: #{tpu_custom_call.1} parent=1 // pred_check_branch
      %16 = sbr.rel (0) target = $region9
    $region8: #{tpu_custom_call.1} parent=1 // pred_region
      %s18 = ssub.s32 2048, 2048
      %19 = vsyncadd [#allocation3], %s18
      %s20 = sshll.u32 [#allocation2], 4
      %s21 = int_to_ptr.vmem [resolvable:$true] %s20
      %26 = dma.hbm_to_vmem [thread:$0]  %s1, 2048, %s21, [#allocation3], 512, 512, 32
    $region9: #{tpu_custom_call.1} parent=1 // pred_fallthru
      _
    // Predicated region
    $region10: #{tpu_custom_call.1} parent=1 // pred_check
      _
    $region11: #{tpu_custom_call.1} parent=1 // pred_check_branch
      %28 = sbr.rel (0) target = $region13
    $region12: #{tpu_custom_call.1} parent=1 // pred_region
      _
    $region13: #{tpu_custom_call.1} parent=1 // pred_fallthru
      _
    // Predicated region
    $region14: #{tpu_custom_call.1} parent=1 // pred_check
      _
    $region15: #{tpu_custom_call.1} parent=1 // pred_check_branch
      %30 = sbr.rel (0) target = $region17
    $region16: #{tpu_custom_call.1} parent=1 // pred_region
      %31 = dma.done [#allocation3], 2048
    $region17: #{tpu_custom_call.1} parent=1 // pred_fallthru
      _
    %v33 = vld [vmem:[%s0] sm:$0xf]
    %v34 = vld [vmem:[%s0 + $0x4] sm:$0xf]
    %v35 = vld [vmem:[%s0 + $0x8] sm:$0xf]
    %v36 = vld [vmem:[%s0 + $0xc] sm:$0xf]
    %v37 = vld [vmem:[%s0 + $0x10] sm:$0xf]
    %v38 = vld [vmem:[%s0 + $0x14] sm:$0xf]
    %v39 = vld [vmem:[%s0 + $0x18] sm:$0xf]
    %v40 = vld [vmem:[%s0 + $0x1c] sm:$0xf]
    %v41 = vld [vmem:[#allocation2] sm:$0xff]
    %v42 = vld [vmem:[#allocation2 + $0x8] sm:$0xff]
    %v43 = vld [vmem:[#allocation2 + $0x10] sm:$0xff]
    %v44 = vld [vmem:[#allocation2 + $0x18] sm:$0xff]
    %v45 = vld [vmem:[#allocation2 + $0x20] sm:$0xff]
    %v46 = vld [vmem:[#allocation2 + $0x28] sm:$0xff]
    %v47 = vld [vmem:[#allocation2 + $0x30] sm:$0xff]
    %v48 = vld [vmem:[#allocation2 + $0x38] sm:$0xff]
    %v49 = vld [vmem:[#allocation2 + $0x40] sm:$0xff]
    %v50 = vld [vmem:[#allocation2 + $0x48] sm:$0xff]
    %v51 = vld [vmem:[#allocation2 + $0x50] sm:$0xff]
    %v52 = vld [vmem:[#allocation2 + $0x58] sm:$0xff]
    %v53 = vld [vmem:[#allocation2 + $0x60] sm:$0xff]
    %v54 = vld [vmem:[#allocation2 + $0x68] sm:$0xff]
    %v55 = vld [vmem:[#allocation2 + $0x70] sm:$0xff]
    %v56 = vld [vmem:[#allocation2 + $0x78] sm:$0xff]
    %v57 = vld [vmem:[%s2] sm:$0xff]
    %v59 = vlaneseq
    %v60 = vshrl.u32 %v59, 7
    %v61 = vsub.s32 0, %v60
    %v62 = vrot.slane %v57, %v61
    %v63 = vlaneseq
    %v64 = vshrl.u32 %v63, 7
    %v65 = vsub.s32 1, %v64
    %v66 = vrot.slane %v57, %v65
    %v67 = vlaneseq
    %v68 = vshrl.u32 %v67, 7
    %v69 = vsub.s32 2, %v68
    %v70 = vrot.slane %v57, %v69
    %v71 = vlaneseq
    %v72 = vshrl.u32 %v71, 7
    %v73 = vsub.s32 3, %v72
    %v74 = vrot.slane %v57, %v73
    %v75 = vlaneseq
    %v76 = vshrl.u32 %v75, 7
    %v77 = vsub.s32 4, %v76
    %v78 = vrot.slane %v57, %v77
    %v79 = vlaneseq
    %v80 = vshrl.u32 %v79, 7
    %v81 = vsub.s32 5, %v80
    %v82 = vrot.slane %v57, %v81
    %v83 = vlaneseq
    %v84 = vshrl.u32 %v83, 7
    %v85 = vsub.s32 6, %v84
    %v86 = vrot.slane %v57, %v85
    %v87 = vlaneseq
    %v88 = vshrl.u32 %v87, 7
    %v89 = vsub.s32 7, %v88
    %v90 = vrot.slane %v57, %v89
    %v107 = vunpack.c.l.b16 %v33
    %v108 = vunpack.c.l.b16 %v34
    %v109 = vunpack.c.l.b16 %v35
    %v110 = vunpack.c.l.b16 %v36
    %v111 = vunpack.c.l.b16 %v37
    %v112 = vunpack.c.l.b16 %v38
    %v113 = vunpack.c.l.b16 %v39
    %v114 = vunpack.c.l.b16 %v40
    %v115 = vpack.c.b16 %v108, %v107
    %v116 = vpack.c.b16 %v110, %v109
    %v117 = vpack.c.b16 %v112, %v111
    %v118 = vpack.c.b16 %v114, %v113
    %v135 = vunpack.c.l.b16 %v41
    %v136 = vunpack.c.h.b16 %v41
    %v137 = vunpack.c.l.b16 %v42
    %v138 = vunpack.c.h.b16 %v42
    %v139 = vunpack.c.l.b16 %v43
    %v140 = vunpack.c.h.b16 %v43
    %v141 = vunpack.c.l.b16 %v44
    %v142 = vunpack.c.h.b16 %v44
    %v143 = vunpack.c.l.b16 %v45
    %v144 = vunpack.c.h.b16 %v45
    %v145 = vunpack.c.l.b16 %v46
    %v146 = vunpack.c.h.b16 %v46
    %v147 = vunpack.c.l.b16 %v47
    %v148 = vunpack.c.h.b16 %v47
    %v149 = vunpack.c.l.b16 %v48
    %v150 = vunpack.c.h.b16 %v48
    %v151 = vunpack.c.l.b16 %v49
    %v152 = vunpack.c.h.b16 %v49
    %v153 = vunpack.c.l.b16 %v50
    %v154 = vunpack.c.h.b16 %v50
    %v155 = vunpack.c.l.b16 %v51
    %v156 = vunpack.c.h.b16 %v51
    %v157 = vunpack.c.l.b16 %v52
    %v158 = vunpack.c.h.b16 %v52
    %v159 = vunpack.c.l.b16 %v53
    %v160 = vunpack.c.h.b16 %v53
    %v161 = vunpack.c.l.b16 %v54
    %v162 = vunpack.c.h.b16 %v54
    %v163 = vunpack.c.l.b16 %v55
    %v164 = vunpack.c.h.b16 %v55
    %v165 = vunpack.c.l.b16 %v56
    %v166 = vunpack.c.h.b16 %v56
    %v167 = vpack.c.b16 %v143, %v135
    %v168 = vpack.c.b16 %v144, %v136
    %v169 = vpack.c.b16 %v145, %v137
    %v170 = vpack.c.b16 %v146, %v138
    %v171 = vpack.c.b16 %v147, %v139
    %v172 = vpack.c.b16 %v148, %v140
    %v173 = vpack.c.b16 %v149, %v141
    %v174 = vpack.c.b16 %v150, %v142
    %v175 = vpack.c.b16 %v159, %v151
    %v176 = vpack.c.b16 %v160, %v152
    %v177 = vpack.c.b16 %v161, %v153
    %v178 = vpack.c.b16 %v162, %v154
    %v179 = vpack.c.b16 %v163, %v155
    %v180 = vpack.c.b16 %v164, %v156
    %v181 = vpack.c.b16 %v165, %v157
    %v182 = vpack.c.b16 %v166, %v158
    %vm199 = vcmask 261120
    %v201 = vsel %vm199, %v115, 0
    %v204 = vsel %vm199, %v116, 0
    %v207 = vsel %vm199, %v117, 0
    %v210 = vsel %vm199, %v118, 0
    %212 = vmatprep.subr.bf16.mxu0 %v168
    %213 = vmatpush1.bf16.msra.mxu0 %v167
    %214 = vmatprep.subr.bf16.mxu0 %v176
    %215 = vmatpush1.bf16.msra.mxu0 %v175
    %216 = vmatprep.subr.bf16.mxu0 0
    %217 = vmatpush1.bf16.msra.mxu0 0
    %218 = vmatprep.subr.bf16.mxu0 0
    %219 = vmatpush1.bf16.msra.mxu0 0
    %220 = vmatprep.subr.bf16.mxu0 0
    %221 = vmatpush1.bf16.msra.mxu0 0
    %222 = vmatprep.subr.bf16.mxu0 0
    %223 = vmatpush1.bf16.msra.mxu0 0
    %224 = vmatprep.subr.bf16.mxu0 0
    %225 = vmatpush1.bf16.msra.mxu0 0
    %226 = vmatprep.subr.bf16.mxu0 0
    %227 = vmatpush1.bf16.msra.mxu0 0
    %228 = vmatprep.subr.bf16.mxu0 0
    %229 = vmatpush1.bf16.msra.mxu0 0
    %230 = vmatprep.subr.bf16.mxu0 0
    %231 = vmatpush1.bf16.msra.mxu0 0
    %232 = vmatprep.subr.bf16.mxu0 0
    %233 = vmatpush1.bf16.msra.mxu0 0
    %234 = vmatprep.subr.bf16.mxu0 0
    %235 = vmatpush1.bf16.msra.mxu0 0
    %236 = vmatprep.subr.bf16.mxu0 0
    %237 = vmatpush1.bf16.msra.mxu0 0
    %238 = vmatprep.subr.bf16.mxu0 0
    %239 = vmatpush1.bf16.msra.mxu0 0
    %240 = vmatprep.subr.bf16.mxu0 0
    %241 = vmatpush1.bf16.msra.mxu0 0
    %242 = vmatprep.subr.bf16.mxu0 0
    %243 = vmatpush1.bf16.msra.mxu0 0
    %244 = vmatprep.mubr.bf16.mxu0 0
    %245 = vmatmul.mubr.bf16.gmra.mrb[0].mxu0 %v201
    %v246 = vpop.f32.mrb[0].mxu0
    %v247 = vadd.f32 %v62, %v246
    %v248 = vpop.f32.mrb[0].mxu0
    %v249 = vadd.f32 %v66, %v248
    %v250 = vpop.f32.mrb[0].mxu0
    %v251 = vadd.f32 %v62, %v250
    %v252 = vpop.f32.mrb[0].mxu0
    %v253 = vadd.f32 %v66, %v252
    %254 = vmatprep.mubr.bf16.mxu0 0
    %255 = vmatmul.mubr.bf16.gmra.mrb[0].mxu0 %v204
    %v256 = vpop.f32.mrb[0].mxu0
    %v257 = vadd.f32 %v62, %v256
    %v258 = vpop.f32.mrb[0].mxu0
    %v259 = vadd.f32 %v66, %v258
    %v260 = vpop.f32.mrb[0].mxu0
    %v261 = vadd.f32 %v62, %v260
    %v262 = vpop.f32.mrb[0].mxu0
    %v263 = vadd.f32 %v66, %v262
    %264 = vmatprep.mubr.bf16.mxu0 0
    %265 = vmatmul.mubr.bf16.gmra.mrb[0].mxu0 %v207
    %v266 = vpop.f32.mrb[0].mxu0
    %v267 = vadd.f32 %v62, %v266
    %v268 = vpop.f32.mrb[0].mxu0
    %v269 = vadd.f32 %v66, %v268
    %v270 = vpop.f32.mrb[0].mxu0
    %v271 = vadd.f32 %v62, %v270
    %v272 = vpop.f32.mrb[0].mxu0
    %v273 = vadd.f32 %v66, %v272
    %274 = vmatprep.mubr.bf16.mxu0 0
    %275 = vmatmul.mubr.bf16.gmra.mrb[0].mxu0 %v210
    %v276 = vpop.f32.mrb[0].mxu0
    %v277 = vadd.f32 %v62, %v276
    %v278 = vpop.f32.mrb[0].mxu0
    %v279 = vadd.f32 %v66, %v278
    %v280 = vpop.f32.mrb[0].mxu0
    %v281 = vadd.f32 %v62, %v280
    %v282 = vpop.f32.mrb[0].mxu0
    %v283 = vadd.f32 %v66, %v282
    %284 = vdwg.mxu0
    %285 = vmatprep.subr.bf16.mxu0 %v170
    %286 = vmatpush1.bf16.msra.mxu0 %v169
    %287 = vmatprep.subr.bf16.mxu0 %v178
    %288 = vmatpush1.bf16.msra.mxu0 %v177
    %289 = vmatprep.subr.bf16.mxu0 0
    %290 = vmatpush1.bf16.msra.mxu0 0
    %291 = vmatprep.subr.bf16.mxu0 0
    %292 = vmatpush1.bf16.msra.mxu0 0
    %293 = vmatprep.subr.bf16.mxu0 0
    %294 = vmatpush1.bf16.msra.mxu0 0
    %295 = vmatprep.subr.bf16.mxu0 0
    %296 = vmatpush1.bf16.msra.mxu0 0
    %297 = vmatprep.subr.bf16.mxu0 0
    %298 = vmatpush1.bf16.msra.mxu0 0
    %299 = vmatprep.subr.bf16.mxu0 0
    %300 = vmatpush1.bf16.msra.mxu0 0
    %301 = vmatprep.subr.bf16.mxu0 0
    %302 = vmatpush1.bf16.msra.mxu0 0
    %303 = vmatprep.subr.bf16.mxu0 0
    %304 = vmatpush1.bf16.msra.mxu0 0
    %305 = vmatprep.subr.bf16.mxu0 0
    %306 = vmatpush1.bf16.msra.mxu0 0
    %307 = vmatprep.subr.bf16.mxu0 0
    %308 = vmatpush1.bf16.msra.mxu0 0
    %309 = vmatprep.subr.bf16.mxu0 0
    %310 = vmatpush1.bf16.msra.mxu0 0
    %311 = vmatprep.subr.bf16.mxu0 0
    %312 = vmatpush1.bf16.msra.mxu0 0
    %313 = vmatprep.subr.bf16.mxu0 0
    %314 = vmatpush1.bf16.msra.mxu0 0
    %315 = vmatprep.subr.bf16.mxu0 0
    %316 = vmatpush1.bf16.msra.mxu0 0
    %317 = vmatprep.mubr.bf16.mxu0 0
    %318 = vmatmul.mubr.bf16.gmra.mrb[0].mxu0 %v201
    %v319 = vpop.f32.mrb[0].mxu0
    %v320 = vadd.f32 %v70, %v319
    %v321 = vpop.f32.mrb[0].mxu0
    %v322 = vadd.f32 %v74, %v321
    %v323 = vpop.f32.mrb[0].mxu0
    %v324 = vadd.f32 %v70, %v323
    %v325 = vpop.f32.mrb[0].mxu0
    %v326 = vadd.f32 %v74, %v325
    %327 = vmatprep.mubr.bf16.mxu0 0
    %328 = vmatmul.mubr.bf16.gmra.mrb[0].mxu0 %v204
    %v329 = vpop.f32.mrb[0].mxu0
    %v330 = vadd.f32 %v70, %v329
    %v331 = vpop.f32.mrb[0].mxu0
    %v332 = vadd.f32 %v74, %v331
    %v333 = vpop.f32.mrb[0].mxu0
    %v334 = vadd.f32 %v70, %v333
    %v335 = vpop.f32.mrb[0].mxu0
    %v336 = vadd.f32 %v74, %v335
    %337 = vmatprep.mubr.bf16.mxu0 0
    %338 = vmatmul.mubr.bf16.gmra.mrb[0].mxu0 %v207
    %v339 = vpop.f32.mrb[0].mxu0
    %v340 = vadd.f32 %v70, %v339
    %v341 = vpop.f32.mrb[0].mxu0
    %v342 = vadd.f32 %v74, %v341
    %v343 = vpop.f32.mrb[0].mxu0
    %v344 = vadd.f32 %v70, %v343
    %v345 = vpop.f32.mrb[0].mxu0
    %v346 = vadd.f32 %v74, %v345
    %347 = vmatprep.mubr.bf16.mxu0 0
    %348 = vmatmul.mubr.bf16.gmra.mrb[0].mxu0 %v210
    %v349 = vpop.f32.mrb[0].mxu0
    %v350 = vadd.f32 %v70, %v349
    %v351 = vpop.f32.mrb[0].mxu0
    %v352 = vadd.f32 %v74, %v351
    %v353 = vpop.f32.mrb[0].mxu0
    %v354 = vadd.f32 %v70, %v353
    %v355 = vpop.f32.mrb[0].mxu0
    %v356 = vadd.f32 %v74, %v355
    %357 = vdwg.mxu0
    %358 = vmatprep.subr.bf16.mxu0 %v172
    %359 = vmatpush1.bf16.msra.mxu0 %v171
    %360 = vmatprep.subr.bf16.mxu0 %v180
    %361 = vmatpush1.bf16.msra.mxu0 %v179
    %362 = vmatprep.subr.bf16.mxu0 0
    %363 = vmatpush1.bf16.msra.mxu0 0
    %364 = vmatprep.subr.bf16.mxu0 0
    %365 = vmatpush1.bf16.msra.mxu0 0
    %366 = vmatprep.subr.bf16.mxu0 0
    %367 = vmatpush1.bf16.msra.mxu0 0
    %368 = vmatprep.subr.bf16.mxu0 0
    %369 = vmatpush1.bf16.msra.mxu0 0
    %370 = vmatprep.subr.bf16.mxu0 0
    %371 = vmatpush1.bf16.msra.mxu0 0
    %372 = vmatprep.subr.bf16.mxu0 0
    %373 = vmatpush1.bf16.msra.mxu0 0
    %374 = vmatprep.subr.bf16.mxu0 0
    %375 = vmatpush1.bf16.msra.mxu0 0
    %376 = vmatprep.subr.bf16.mxu0 0
    %377 = vmatpush1.bf16.msra.mxu0 0
    %378 = vmatprep.subr.bf16.mxu0 0
    %379 = vmatpush1.bf16.msra.mxu0 0
    %380 = vmatprep.subr.bf16.mxu0 0
    %381 = vmatpush1.bf16.msra.mxu0 0
    %382 = vmatprep.subr.bf16.mxu0 0
    %383 = vmatpush1.bf16.msra.mxu0 0
    %384 = vmatprep.subr.bf16.mxu0 0
    %385 = vmatpush1.bf16.msra.mxu0 0
    %386 = vmatprep.subr.bf16.mxu0 0
    %387 = vmatpush1.bf16.msra.mxu0 0
    %388 = vmatprep.subr.bf16.mxu0 0
    %389 = vmatpush1.bf16.msra.mxu0 0
    %390 = vmatprep.mubr.bf16.mxu0 0
    %391 = vmatmul.mubr.bf16.gmra.mrb[0].mxu0 %v201
    %v392 = vpop.f32.mrb[0].mxu0
    %v393 = vadd.f32 %v78, %v392
    %v394 = vpop.f32.mrb[0].mxu0
    %v395 = vadd.f32 %v82, %v394
    %v396 = vpop.f32.mrb[0].mxu0
    %v397 = vadd.f32 %v78, %v396
    %v398 = vpop.f32.mrb[0].mxu0
    %v399 = vadd.f32 %v82, %v398
    %400 = vmatprep.mubr.bf16.mxu0 0
    %401 = vmatmul.mubr.bf16.gmra.mrb[0].mxu0 %v204
    %v402 = vpop.f32.mrb[0].mxu0
    %v403 = vadd.f32 %v78, %v402
    %v404 = vpop.f32.mrb[0].mxu0
    %v405 = vadd.f32 %v82, %v404
    %v406 = vpop.f32.mrb[0].mxu0
    %v407 = vadd.f32 %v78, %v406
    %v408 = vpop.f32.mrb[0].mxu0
    %v409 = vadd.f32 %v82, %v408
    %410 = vmatprep.mubr.bf16.mxu0 0
    %411 = vmatmul.mubr.bf16.gmra.mrb[0].mxu0 %v207
    %v412 = vpop.f32.mrb[0].mxu0
    %v413 = vadd.f32 %v78, %v412
    %v414 = vpop.f32.mrb[0].mxu0
    %v415 = vadd.f32 %v82, %v414
    %v416 = vpop.f32.mrb[0].mxu0
    %v417 = vadd.f32 %v78, %v416
    %v418 = vpop.f32.mrb[0].mxu0
    %v419 = vadd.f32 %v82, %v418
    %420 = vmatprep.mubr.bf16.mxu0 0
    %421 = vmatmul.mubr.bf16.gmra.mrb[0].mxu0 %v210
    %v422 = vpop.f32.mrb[0].mxu0
    %v423 = vadd.f32 %v78, %v422
    %v424 = vpop.f32.mrb[0].mxu0
    %v425 = vadd.f32 %v82, %v424
    %v426 = vpop.f32.mrb[0].mxu0
    %v427 = vadd.f32 %v78, %v426
    %v428 = vpop.f32.mrb[0].mxu0
    %v429 = vadd.f32 %v82, %v428
    %430 = vdwg.mxu0
    %431 = vmatprep.subr.bf16.mxu0 %v174
    %432 = vmatpush1.bf16.msra.mxu0 %v173
    %433 = vmatprep.subr.bf16.mxu0 %v182
    %434 = vmatpush1.bf16.msra.mxu0 %v181
    %435 = vmatprep.subr.bf16.mxu0 0
    %436 = vmatpush1.bf16.msra.mxu0 0
    %437 = vmatprep.subr.bf16.mxu0 0
    %438 = vmatpush1.bf16.msra.mxu0 0
    %439 = vmatprep.subr.bf16.mxu0 0
    %440 = vmatpush1.bf16.msra.mxu0 0
    %441 = vmatprep.subr.bf16.mxu0 0
    %442 = vmatpush1.bf16.msra.mxu0 0
    %443 = vmatprep.subr.bf16.mxu0 0
    %444 = vmatpush1.bf16.msra.mxu0 0
    %445 = vmatprep.subr.bf16.mxu0 0
    %446 = vmatpush1.bf16.msra.mxu0 0
    %447 = vmatprep.subr.bf16.mxu0 0
    %448 = vmatpush1.bf16.msra.mxu0 0
    %449 = vmatprep.subr.bf16.mxu0 0
    %450 = vmatpush1.bf16.msra.mxu0 0
    %451 = vmatprep.subr.bf16.mxu0 0
    %452 = vmatpush1.bf16.msra.mxu0 0
    %453 = vmatprep.subr.bf16.mxu0 0
    %454 = vmatpush1.bf16.msra.mxu0 0
    %455 = vmatprep.subr.bf16.mxu0 0
    %456 = vmatpush1.bf16.msra.mxu0 0
    %457 = vmatprep.subr.bf16.mxu0 0
    %458 = vmatpush1.bf16.msra.mxu0 0
    %459 = vmatprep.subr.bf16.mxu0 0
    %460 = vmatpush1.bf16.msra.mxu0 0
    %461 = vmatprep.subr.bf16.mxu0 0
    %462 = vmatpush1.bf16.msra.mxu0 0
    %463 = vmatprep.mubr.bf16.mxu0 0
    %464 = vmatmul.mubr.bf16.gmra.mrb[0].mxu0 %v201
    %v465 = vpop.f32.mrb[0].mxu0
    %v466 = vadd.f32 %v86, %v465
    %v467 = vpop.f32.mrb[0].mxu0
    %v468 = vadd.f32 %v90, %v467
    %v469 = vpop.f32.mrb[0].mxu0
    %v470 = vadd.f32 %v86, %v469
    %v471 = vpop.f32.mrb[0].mxu0
    %v472 = vadd.f32 %v90, %v471
    %473 = vmatprep.mubr.bf16.mxu0 0
    %474 = vmatmul.mubr.bf16.gmra.mrb[0].mxu0 %v204
    %v475 = vpop.f32.mrb[0].mxu0
    %v476 = vadd.f32 %v86, %v475
    %v477 = vpop.f32.mrb[0].mxu0
    %v478 = vadd.f32 %v90, %v477
    %v479 = vpop.f32.mrb[0].mxu0
    %v480 = vadd.f32 %v86, %v479
    %v481 = vpop.f32.mrb[0].mxu0
    %v482 = vadd.f32 %v90, %v481
    %483 = vmatprep.mubr.bf16.mxu0 0
    %484 = vmatmul.mubr.bf16.gmra.mrb[0].mxu0 %v207
    %v485 = vpop.f32.mrb[0].mxu0
    %v486 = vadd.f32 %v86, %v485
    %v487 = vpop.f32.mrb[0].mxu0
    %v488 = vadd.f32 %v90, %v487
    %v489 = vpop.f32.mrb[0].mxu0
    %v490 = vadd.f32 %v86, %v489
    %v491 = vpop.f32.mrb[0].mxu0
    %v492 = vadd.f32 %v90, %v491
    %493 = vmatprep.mubr.bf16.mxu0 0
    %494 = vmatmul.mubr.bf16.gmra.mrb[0].mxu0 %v210
    %v495 = vpop.f32.mrb[0].mxu0
    %v496 = vadd.f32 %v86, %v495
    %v497 = vpop.f32.mrb[0].mxu0
    %v498 = vadd.f32 %v90, %v497
    %v499 = vpop.f32.mrb[0].mxu0
    %v500 = vadd.f32 %v86, %v499
    %v501 = vpop.f32.mrb[0].mxu0
    %v502 = vadd.f32 %v90, %v501
    %503 = vdwg.mxu0
    %v504 = vpack.c.bf16 %v251, %v247
    %v505 = vpack.c.bf16 %v253, %v249
    %v506 = vpack.c.bf16 %v324, %v320
    %v507 = vpack.c.bf16 %v326, %v322
    %v508 = vpack.c.bf16 %v261, %v257
    %v509 = vpack.c.bf16 %v263, %v259
    %v510 = vpack.c.bf16 %v334, %v330
    %v511 = vpack.c.bf16 %v336, %v332
    %v512 = vpack.c.bf16 %v271, %v267
    %v513 = vpack.c.bf16 %v273, %v269
    %v514 = vpack.c.bf16 %v344, %v340
    %v515 = vpack.c.bf16 %v346, %v342
    %v516 = vpack.c.bf16 %v281, %v277
    %v517 = vpack.c.bf16 %v283, %v279
    %v518 = vpack.c.bf16 %v354, %v350
    %v519 = vpack.c.bf16 %v356, %v352
    %v536 = vunpack.c.l.b16 %v504
    %v537 = vunpack.c.l.b16 %v505
    %v538 = vunpack.c.l.b16 %v506
    %v539 = vunpack.c.l.b16 %v507
    %v540 = vunpack.c.h.b16 %v504
    %v541 = vunpack.c.h.b16 %v505
    %v542 = vunpack.c.h.b16 %v506
    %v543 = vunpack.c.h.b16 %v507
    %v544 = vunpack.c.l.b16 %v508
    %v545 = vunpack.c.l.b16 %v509
    %v546 = vunpack.c.l.b16 %v510
    %v547 = vunpack.c.l.b16 %v511
    %v548 = vunpack.c.h.b16 %v508
    %v549 = vunpack.c.h.b16 %v509
    %v550 = vunpack.c.h.b16 %v510
    %v551 = vunpack.c.h.b16 %v511
    %v552 = vunpack.c.l.b16 %v512
    %v553 = vunpack.c.l.b16 %v513
    %v554 = vunpack.c.l.b16 %v514
    %v555 = vunpack.c.l.b16 %v515
    %v556 = vunpack.c.h.b16 %v512
    %v557 = vunpack.c.h.b16 %v513
    %v558 = vunpack.c.h.b16 %v514
    %v559 = vunpack.c.h.b16 %v515
    %v560 = vunpack.c.l.b16 %v516
    %v561 = vunpack.c.l.b16 %v517
    %v562 = vunpack.c.l.b16 %v518
    %v563 = vunpack.c.l.b16 %v519
    %v564 = vunpack.c.h.b16 %v516
    %v565 = vunpack.c.h.b16 %v517
    %v566 = vunpack.c.h.b16 %v518
    %v567 = vunpack.c.h.b16 %v519
    %v568 = vpack.c.b16 %v537, %v536
    %v569 = vpack.c.b16 %v539, %v538
    %v570 = vpack.c.b16 %v541, %v540
    %v571 = vpack.c.b16 %v543, %v542
    %v572 = vpack.c.b16 %v545, %v544
    %v573 = vpack.c.b16 %v547, %v546
    %v574 = vpack.c.b16 %v549, %v548
    %v575 = vpack.c.b16 %v551, %v550
    %v576 = vpack.c.b16 %v553, %v552
    %v577 = vpack.c.b16 %v555, %v554
    %v578 = vpack.c.b16 %v557, %v556
    %v579 = vpack.c.b16 %v559, %v558
    %v580 = vpack.c.b16 %v561, %v560
    %v581 = vpack.c.b16 %v563, %v562
    %v582 = vpack.c.b16 %v565, %v564
    %v583 = vpack.c.b16 %v567, %v566
    %600 = vst [vmem:[#allocation5] sm:$0xff] %v568
    %601 = vst [vmem:[#allocation5 + $0x8] sm:$0xff] %v569
    %602 = vst [vmem:[#allocation5 + $0x10] sm:$0xff] %v570
    %603 = vst [vmem:[#allocation5 + $0x18] sm:$0xff] %v571
    %604 = vst [vmem:[#allocation5 + $0x20] sm:$0xff] %v572
    %605 = vst [vmem:[#allocation5 + $0x28] sm:$0xff] %v573
    %606 = vst [vmem:[#allocation5 + $0x30] sm:$0xff] %v574
    %607 = vst [vmem:[#allocation5 + $0x38] sm:$0xff] %v575
    %608 = vst [vmem:[#allocation5 + $0x40] sm:$0xff] %v576
    %609 = vst [vmem:[#allocation5 + $0x48] sm:$0xff] %v577
    %610 = vst [vmem:[#allocation5 + $0x50] sm:$0xff] %v578
    %611 = vst [vmem:[#allocation5 + $0x58] sm:$0xff] %v579
    %612 = vst [vmem:[#allocation5 + $0x60] sm:$0xff] %v580
    %613 = vst [vmem:[#allocation5 + $0x68] sm:$0xff] %v581
    %614 = vst [vmem:[#allocation5 + $0x70] sm:$0xff] %v582
    %615 = vst [vmem:[#allocation5 + $0x78] sm:$0xff] %v583
    %v616 = vpack.c.bf16 %v397, %v393
    %v617 = vpack.c.bf16 %v399, %v395
    %v618 = vpack.c.bf16 %v470, %v466
    %v619 = vpack.c.bf16 %v472, %v468
    %v620 = vpack.c.bf16 %v407, %v403
    %v621 = vpack.c.bf16 %v409, %v405
    %v622 = vpack.c.bf16 %v480, %v476
    %v623 = vpack.c.bf16 %v482, %v478
    %v624 = vpack.c.bf16 %v417, %v413
    %v625 = vpack.c.bf16 %v419, %v415
    %v626 = vpack.c.bf16 %v490, %v486
    %v627 = vpack.c.bf16 %v492, %v488
    %v628 = vpack.c.bf16 %v427, %v423
    %v629 = vpack.c.bf16 %v429, %v425
    %v630 = vpack.c.bf16 %v500, %v496
    %v631 = vpack.c.bf16 %v502, %v498
    %v648 = vunpack.c.l.b16 %v616
    %v649 = vunpack.c.l.b16 %v617
    %v650 = vunpack.c.l.b16 %v618
    %v651 = vunpack.c.l.b16 %v619
    %v652 = vunpack.c.h.b16 %v616
    %v653 = vunpack.c.h.b16 %v617
    %v654 = vunpack.c.h.b16 %v618
    %v655 = vunpack.c.h.b16 %v619
    %v656 = vunpack.c.l.b16 %v620
    %v657 = vunpack.c.l.b16 %v621
    %v658 = vunpack.c.l.b16 %v622
    %v659 = vunpack.c.l.b16 %v623
    %v660 = vunpack.c.h.b16 %v620
    %v661 = vunpack.c.h.b16 %v621
    %v662 = vunpack.c.h.b16 %v622
    %v663 = vunpack.c.h.b16 %v623
    %v664 = vunpack.c.l.b16 %v624
    %v665 = vunpack.c.l.b16 %v625
    %v666 = vunpack.c.l.b16 %v626
    %v667 = vunpack.c.l.b16 %v627
    %v668 = vunpack.c.h.b16 %v624
    %v669 = vunpack.c.h.b16 %v625
    %v670 = vunpack.c.h.b16 %v626
    %v671 = vunpack.c.h.b16 %v627
    %v672 = vunpack.c.l.b16 %v628
    %v673 = vunpack.c.l.b16 %v629
    %v674 = vunpack.c.l.b16 %v630
    %v675 = vunpack.c.l.b16 %v631
    %v676 = vunpack.c.h.b16 %v628
    %v677 = vunpack.c.h.b16 %v629
    %v678 = vunpack.c.h.b16 %v630
    %v679 = vunpack.c.h.b16 %v631
    %v680 = vpack.c.b16 %v649, %v648
    %v681 = vpack.c.b16 %v651, %v650
    %v682 = vpack.c.b16 %v653, %v652
    %v683 = vpack.c.b16 %v655, %v654
    %v684 = vpack.c.b16 %v657, %v656
    %v685 = vpack.c.b16 %v659, %v658
    %v686 = vpack.c.b16 %v661, %v660
    %v687 = vpack.c.b16 %v663, %v662
    %v688 = vpack.c.b16 %v665, %v664
    %v689 = vpack.c.b16 %v667, %v666
    %v690 = vpack.c.b16 %v669, %v668
    %v691 = vpack.c.b16 %v671, %v670
    %v692 = vpack.c.b16 %v673, %v672
    %v693 = vpack.c.b16 %v675, %v674
    %v694 = vpack.c.b16 %v677, %v676
    %v695 = vpack.c.b16 %v679, %v678
    %712 = vst [vmem:[#allocation6] sm:$0xff] %v680
    %713 = vst [vmem:[#allocation6 + $0x8] sm:$0xff] %v681
    %714 = vst [vmem:[#allocation6 + $0x10] sm:$0xff] %v682
    %715 = vst [vmem:[#allocation6 + $0x18] sm:$0xff] %v683
    %716 = vst [vmem:[#allocation6 + $0x20] sm:$0xff] %v684
    %717 = vst [vmem:[#allocation6 + $0x28] sm:$0xff] %v685
    %718 = vst [vmem:[#allocation6 + $0x30] sm:$0xff] %v686
    %719 = vst [vmem:[#allocation6 + $0x38] sm:$0xff] %v687
    %720 = vst [vmem:[#allocation6 + $0x40] sm:$0xff] %v688
    %721 = vst [vmem:[#allocation6 + $0x48] sm:$0xff] %v689
    %722 = vst [vmem:[#allocation6 + $0x50] sm:$0xff] %v690
    %723 = vst [vmem:[#allocation6 + $0x58] sm:$0xff] %v691
    %724 = vst [vmem:[#allocation6 + $0x60] sm:$0xff] %v692
    %725 = vst [vmem:[#allocation6 + $0x68] sm:$0xff] %v693
    %726 = vst [vmem:[#allocation6 + $0x70] sm:$0xff] %v694
    %727 = vst [vmem:[#allocation6 + $0x78] sm:$0xff] %v695
    // Predicated region
    $region18: #{tpu_custom_call.1} parent=1 // pred_check
      _
    $region19: #{tpu_custom_call.1} parent=1 // pred_check_branch
      %729 = sbr.rel (0) target = $region21
    $region20: #{tpu_custom_call.1} parent=1 // pred_region
      %s731 = ssub.s32 2048, 2048
      %732 = vsyncadd [#allocation4], %s731
      %s733 = sshll.u32 [#allocation5], 4
      %s734 = int_to_ptr.vmem [resolvable:$true] %s733
      %739 = dma.vmem_to_hbm [thread:$0]  %s734, 2048, %s3, [#allocation4], 256, 256, 16
    $region21: #{tpu_custom_call.1} parent=1 // pred_fallthru
      _
    // Predicated region
    $region22: #{tpu_custom_call.1} parent=1 // pred_check
      _
    $region23: #{tpu_custom_call.1} parent=1 // pred_check_branch
      %741 = sbr.rel (0) target = $region25
    $region24: #{tpu_custom_call.1} parent=1 // pred_region
      %s743 = ssub.s32 2048, 2048
      %744 = vsyncadd [#allocation7], %s743
      %s745 = sshll.u32 [#allocation6], 4
      %s746 = int_to_ptr.vmem [resolvable:$true] %s745
      %751 = dma.vmem_to_hbm [thread:$0]  %s746, 2048, %s4, [#allocation7], 256, 256, 16
    $region25: #{tpu_custom_call.1} parent=1 // pred_fallthru
      _
    // Predicated region
    $region26: #{tpu_custom_call.1} parent=1 // pred_check
      _
    $region27: #{tpu_custom_call.1} parent=1 // pred_check_branch
      %753 = sbr.rel (0) target = $region29
    $region28: #{tpu_custom_call.1} parent=1 // pred_region
      %754 = dma.done [#allocation4], 2048
    $region29: #{tpu_custom_call.1} parent=1 // pred_fallthru
      _
    // Predicated region
    $region30: #{tpu_custom_call.1} parent=1 // pred_check
      _
    $region31: #{tpu_custom_call.1} parent=1 // pred_check_branch
      %756 = sbr.rel (0) target = $region33
    $region32: #{tpu_custom_call.1} parent=1 // pred_region
      %757 = dma.done [#allocation7], 2048
    $region33: #{tpu_custom_call.1} parent=1 // pred_fallthru
      _
    %758 = vsyncpa [#allocation3], 1
    %759 = vsyncpa [#allocation4], 1
    %760 = vsyncpa [#allocation7], 1

</llo_original>
